<compile_context>
chip_gen: v7x
topology: tpu7x:2x2x1
jax: 0.10.0
libtpu: 0.0.40
codegen_flags: <defaults>
</compile_context>

<pallas_src>
import jax
import jax.numpy as jnp
from jax.experimental import pallas as pl
from jax.experimental.pallas import tpu as pltpu


def _relu_kernel(x_ref, o_ref):
    # VPU elementwise max against a scalar-splat zero (weak-typed 0 keeps dtype).
    o_ref[...] = jnp.maximum(x_ref[...], 0)


def _sublane_pack(dtype) -> int:
    itemsize = jnp.dtype(dtype).itemsize
    return {4: 8, 2: 16, 1: 32}.get(itemsize, 8)


def _chip_tuning():
    """Per-generation (bytes per block buffer, scoped-VMEM limit)."""
    kind = ""
    try:
        kind = jax.devices()[0].device_kind.lower()
    except Exception:
        pass
    if "v7" in kind:        # ~3.2 TB/s HBM, 64 MiB physical VMEM
        return 6 * 1024 * 1024, 48 * 1024 * 1024
    if "v6" in kind:        # ~1.4 TB/s HBM, 128 MiB physical VMEM
        return 8 * 1024 * 1024, 64 * 1024 * 1024
    if "v5e" in kind or "v5 lite" in kind or "v5lite" in kind:
        return 3 * 1024 * 1024, 24 * 1024 * 1024   # ~0.82 TB/s, 128 MiB physical
    return 4 * 1024 * 1024, 32 * 1024 * 1024


def _relu_slab_2d(x2d: jax.Array) -> jax.Array:
    """ReLU over a contiguous 2D slab (rows, L); the grid tiles rows only."""
    rows, L = x2d.shape
    dtype = x2d.dtype
    itemsize = jnp.dtype(dtype).itemsize
    sub = _sublane_pack(dtype)
    n = rows * L
    target_bytes, vmem_limit = _chip_tuning()

    # Block rows: aim for ~target_bytes per buffer, sublane-aligned.
    block_rows = (target_bytes // (L * itemsize)) // sub * sub
    block_rows = max(sub, block_rows)
    if block_rows >= rows:
        block_rows = rows  # single block == full array dims (always legal)
    grid = (pl.cdiv(rows, block_rows),)  # partial last block masked by Pallas

    return pl.pallas_call(
        _relu_kernel,
        out_shape=jax.ShapeDtypeStruct((rows, L), dtype),
        grid_spec=pltpu.PrefetchScalarGridSpec(
            num_scalar_prefetch=0,
            grid=grid,
            in_specs=[pl.BlockSpec((block_rows, L), lambda i: (i, 0))],
            out_specs=pl.BlockSpec((block_rows, L), lambda i: (i, 0)),
        ),
        compiler_params=pltpu.CompilerParams(
            dimension_semantics=("parallel",),
            vmem_limit_bytes=vmem_limit,
        ),
        input_output_aliases={0: 0},
        cost_estimate=pl.CostEstimate(
            flops=n, transcendentals=0, bytes_accessed=2 * n * itemsize
        ),
    )(x2d)


# Non-128-multiple sizes at or below this run as a single full-array block
# (keeps sublane-padding waste of a (1, n) block well within VMEM budgets).
_SMALL_ODD_BYTES = 256 * 1024


def relu_pallas(x: jax.Array) -> jax.Array:
    """ReLU via a Pallas TPU kernel. Works for any shape / numeric dtype."""
    orig_shape = x.shape
    dtype = x.dtype
    n = x.size
    if n == 0:
        return x
    itemsize = jnp.dtype(dtype).itemsize

    if n % 128 == 0:
        # Exact-fit lane-dense slab: no pad, no slice. Any L that is a
        # multiple of 128 already gives contiguous long DMAs per block.
        L = 128
        for cand in (2048, 1024, 512, 256):
            if n % cand == 0:
                L = cand
                break
        y2d = _relu_slab_2d(x.reshape(n // L, L))
        return y2d.reshape(orig_shape)

    flat = x.reshape(-1)
    if n * itemsize <= _SMALL_ODD_BYTES:
        # Small non-aligned size: one full-array block — still no pad/slice.
        y2d = _relu_slab_2d(flat.reshape(1, n))
        return y2d.reshape(orig_shape)

    # Large non-aligned size: kernel over the 128-aligned bulk prefix, plain
    # VPU max on the <128-element tail. Avoids whole-array pad + unpad copies.
    bulk = (n // 128) * 128
    L = 128
    for cand in (2048, 1024, 512, 256):
        if bulk % cand == 0:
            L = cand
            break
    y_bulk = _relu_slab_2d(flat[:bulk].reshape(bulk // L, L)).reshape(-1)
    y_tail = jnp.maximum(flat[bulk:], 0)
    return jnp.concatenate([y_bulk, y_tail]).reshape(orig_shape)


if __name__ == "__main__":
    key = jax.random.PRNGKey(0)

    # Small NCHW input consistent with a typical conv-style module.
    x = jax.random.normal(key, (2, 4, 16, 16), dtype=jnp.float32)
    y_ref = jnp.maximum(x, 0.0)
    y = relu_pallas(x)
    jax.block_until_ready(y)
    assert y.shape == x.shape and y.dtype == x.dtype
    assert jnp.allclose(y, y_ref), "mismatch vs reference ReLU"

    # Odd total size (not a multiple of 128): exercises the single-block path.
    x_odd = jax.random.normal(jax.random.PRNGKey(1), (3, 5, 7), dtype=jnp.float32)
    y_odd_ref = jnp.maximum(x_odd, 0.0)
    y_odd = relu_pallas(x_odd)
    jax.block_until_ready(y_odd)
    assert jnp.allclose(y_odd, y_odd_ref), "mismatch on odd shape"

    # 128-multiple size with a non-sublane-aligned row count: exercises the
    # relaxed exact-fit path (previously fell into the pad fallback).
    x3 = jax.random.normal(jax.random.PRNGKey(2), (3, 128), dtype=jnp.float32)
    y3_ref = jnp.maximum(x3, 0.0)
    y3 = relu_pallas(x3)
    jax.block_until_ready(y3)
    assert jnp.allclose(y3, y3_ref), "mismatch on (3,128) shape"

    # Larger non-aligned size: exercises the bulk-prefix + tail path.
    x4 = jax.random.normal(jax.random.PRNGKey(3), (65599,), dtype=jnp.float32)
    y4_ref = jnp.maximum(x4, 0.0)
    y4 = relu_pallas(x4)
    jax.block_until_ready(y4)
    assert jnp.allclose(y4, y4_ref), "mismatch on bulk+tail shape"

    print("KERNEL_OK")
</pallas_src>

<mosaic_0001>
module attributes {stable_mosaic.version = 11 : i64} {
  func.func @_relu_kernel(%arg0: i32, %arg1: memref<1x2048xf32, #tpu.memory_space<vmem>>, %arg2: memref<1x2048xf32, #tpu.memory_space<vmem>>) attributes {dimension_semantics = [#tpu.dimension_semantics<parallel>], iteration_bounds = array<i64: 1>, scalar_prefetch = 0 : i64, scratch_operands = 0 : i64, tpu.core_type = #tpu.core_type<tc>, window_params = [{transform_indices = @transform_0, window_bounds = array<i64: 1, 2048>}, {transform_indices = @transform_1, window_bounds = array<i64: 1, 2048>}]} {
    %c0 = arith.constant 0 : index
    %c0_0 = arith.constant 0 : index
    %0 = vector.load %arg1[%c0, %c0_0] : memref<1x2048xf32, #tpu.memory_space<vmem>>, vector<1x2048xf32>
    %cst = arith.constant 0.000000e+00 : f32
    %1 = vector.broadcast %cst : f32 to vector<1x2048xf32>
    %2 = arith.maximumf %0, %1 : vector<1x2048xf32>
    %c0_1 = arith.constant 0 : index
    %c0_2 = arith.constant 0 : index
    %3 = vector.load %arg2[%c0_1, %c0_2] : memref<1x2048xf32, #tpu.memory_space<vmem>>, vector<1x2048xf32>
    tpu.vector_store %arg2[%c0_1, %c0_2], %2 {strides = array<i32>} : memref<1x2048xf32, #tpu.memory_space<vmem>>, vector<1x2048xf32>,
    return
  }
  func.func @transform_0(%arg0: i32) -> (i32, i32) {
    %c0_i32 = arith.constant 0 : i32
    %c0_i32_0 = arith.constant 0 : i32
    return %arg0, %c0_i32 : i32, i32
  }
  func.func @transform_1(%arg0: i32) -> (i32, i32) {
    %c0_i32 = arith.constant 0 : i32
    %c0_i32_0 = arith.constant 0 : i32
    return %arg0, %c0_i32 : i32, i32
  }
}

</mosaic_0001>

<llo_original>
// kernel: tpu_custom_call.1
$region0: #{tpu_custom_call.1}
  #allocation0 [shape = 'u32[]', space=smem, size = 0x4, offset = 0x4, fixed_abs, tag = 'smem constant byte address 0x4 - core index']
  #allocation1 [shape = 'u32[144,128]{1,0:T(1,128)}', space=vmem, size = 0x12000, scoped, tag = 'internal scratch']
  %s0 = inlined_call_operand.hbm [shape: f32[1,2048], index: 0, kind: input, shape index: {}, may-alias: {0,1}]
  %s1 = inlined_call_operand.hbm [shape: f32[1,2048], index: 1, kind: output, shape index: {}, may-alias: {0,1}]
  %s2 = sld [smem:[#allocation0]]
  $region18: #{tpu_custom_call.1} parent=0
    _
  %s4 = ssub.s32 1, %s2
  %s5 = scalar_select 0, %s4, %s2
  $region1: #{tpu_custom_call.1} parent=0
    #allocation2 [shape = 'u8[8192]{0}', space=vmem, size = 0x2000, scoped, tag = 'input window, operand 0, single buffered']
    #allocation3 [shape = 's32[1]{0}', space=sflag, size = 0x4, scoped, tag = 'scoped memory for tpu_custom_call.1']
    #allocation4 [shape = 's32[1]{0}', space=sflag, size = 0x4, scoped, tag = 'scoped memory for tpu_custom_call.1']
    #allocation5 [shape = 'u8[8192]{0}', space=vmem, size = 0x2000, scoped, tag = 'output window, operand 0, single buffered']
    %6 = vsyncpa [#allocation3], 0
    %7 = vsyncpa [#allocation4], 0
    // Predicated region
    $region2: #{tpu_custom_call.1} parent=1 // pred_check
      _
    $region3: #{tpu_custom_call.1} parent=1 // pred_check_branch
      %9 = sbr.rel (0) target = $region5
    $region4: #{tpu_custom_call.1} parent=1 // pred_region
      %s11 = ssub.s32 256, 256
      %12 = vsyncadd [#allocation3], %s11
      %s14 = sshll.u32 [#allocation2], 4
      %s15 = int_to_ptr.vmem [resolvable:$true] %s14
      %17 = dma.hbm_to_vmem [thread:$0]  %s0, 256, %s15, [#allocation3]
    $region5: #{tpu_custom_call.1} parent=1 // pred_fallthru
      _
    // Predicated region
    $region6: #{tpu_custom_call.1} parent=1 // pred_check
      _
    $region7: #{tpu_custom_call.1} parent=1 // pred_check_branch
      %19 = sbr.rel (0) target = $region9
    $region8: #{tpu_custom_call.1} parent=1 // pred_region
      %20 = dma.done [#allocation3], 256
    $region9: #{tpu_custom_call.1} parent=1 // pred_fallthru
      _
    %v21 = vld [vmem:[#allocation2] sm:$0xff]
    %v22 = vld [vmem:[#allocation2 + $0x8] sm:$0xff]
    %v23 = vmax.f32 %v21, 0.0
    %v24 = vmax.f32 %v22, 0.0
    %25 = vst [vmem:[#allocation5] sm:$0xff] %v23
    %26 = vst [vmem:[#allocation5 + $0x8] sm:$0xff] %v24
    // Predicated region
    $region10: #{tpu_custom_call.1} parent=1 // pred_check
      _
    $region11: #{tpu_custom_call.1} parent=1 // pred_check_branch
      %28 = sbr.rel (0) target = $region13
    $region12: #{tpu_custom_call.1} parent=1 // pred_region
      %s30 = ssub.s32 256, 256
      %31 = vsyncadd [#allocation4], %s30
      %s33 = sshll.u32 [#allocation5], 4
      %s34 = int_to_ptr.vmem [resolvable:$true] %s33
      %36 = dma.vmem_to_hbm [thread:$0]  %s34, 256, %s1, [#allocation4]
    $region13: #{tpu_custom_call.1} parent=1 // pred_fallthru
      _
    // Predicated region
    $region14: #{tpu_custom_call.1} parent=1 // pred_check
      _
    $region15: #{tpu_custom_call.1} parent=1 // pred_check_branch
      %38 = sbr.rel (0) target = $region17
    $region16: #{tpu_custom_call.1} parent=1 // pred_region
      %39 = dma.done [#allocation4], 256
    $region17: #{tpu_custom_call.1} parent=1 // pred_fallthru
      _
    %40 = vsyncpa [#allocation3], 1
    %41 = vsyncpa [#allocation4], 1

</llo_original>
